<compile_context>
chip_gen: v7x
topology: tpu7x:2x2x1
jax: 0.10.0
libtpu: 0.0.40
codegen_flags: <defaults>
</compile_context>

<pallas_src>
import functools

import jax
import jax.numpy as jnp
from jax.experimental import pallas as pl
from jax.experimental.pallas import tpu as pltpu

EPS = 1e-5
LANE = 128
# 2048 sublanes x 128 lanes x 4 B = 1 MiB per input per pipeline buffer
# (2 inputs x 2 buffers = 4 MiB of pipeline VMEM) -- safe on v5e/v6e/v7x budgets
# while large enough to amortize the ~0.35 us per-grid-step overhead.
MAX_SUB_TILE = 2048


def _dice_partial_kernel(pred_ref, gt_ref, out_ref, inter_acc, union_acc, *,
                         activation, hw, hw_pad, sub_tile):
    k = pl.program_id(2)

    @pl.when(k == 0)
    def _init():
        inter_acc[...] = jnp.zeros_like(inter_acc)
        union_acc[...] = jnp.zeros_like(union_acc)

    pred = pred_ref[...].astype(jnp.float32)   # (sub_tile, 128)
    gt = gt_ref[...].astype(jnp.float32)

    if activation == "sigmoid":
        pred = jax.nn.sigmoid(pred)
        if hw_pad != hw:
            # Zero padding is only neutral under the identity activation; mask the
            # padded tail after sigmoid so it does not inflate the union sum.
            row = jax.lax.broadcasted_iota(jnp.int32, pred.shape, 0)
            lane = jax.lax.broadcasted_iota(jnp.int32, pred.shape, 1)
            flat = (k * sub_tile + row) * LANE + lane
            pred = jnp.where(flat < hw, pred, 0.0)
    elif activation not in (None, "none"):
        raise NotImplementedError("Activation implemented for None / sigmoid")
    # TODO(synk): 'softmax2d' (cross-channel Softmax2d) needs all classes of a pixel
    # in one block; not wired in (the module's default is activation=None).

    # Per-lane partial sums: sublane reduce per step (XLU slot, free while DMA-bound),
    # accumulate 128-lane vectors across the HW grid axis in VMEM scratch.
    inter_acc[...] += jnp.sum(pred * gt, axis=0, keepdims=True)   # (1, 128)
    union_acc[...] += jnp.sum(pred + gt, axis=0, keepdims=True)   # (1, 128)

    @pl.when(k == pl.num_programs(2) - 1)
    def _finalize():
        out_ref[0:1, :] = inter_acc[...]
        out_ref[1:2, :] = union_acc[...]


def dice_partial_sums(y_pred, y_true, num_classes, activation=None):
    """Per-(sample, class) 128-lane partial sums for classes 1..num_classes-1.

    Returns float32 (N, num_classes-1, 2, 128) where
      out[..., 0, :].sum(-1) == sum(pred*gt)
      out[..., 1, :].sum(-1) == sum(pred) + sum(gt)
    """
    N, C, H, W = y_pred.shape
    assert y_true.shape == y_pred.shape, "pred / gt shape mismatch"
    assert 2 <= num_classes <= C, "need at least 2 classes and C >= num_classes"
    Cm1 = num_classes - 1
    HW = H * W

    S = pl.cdiv(HW, LANE)
    if S <= MAX_SUB_TILE:
        sub_tile = S                      # full-extent block (no (8,128) issue)
        S_pad = S
    else:
        sub_tile = MAX_SUB_TILE           # multiple of 8
        S_pad = pl.cdiv(S, sub_tile) * sub_tile
    HW_pad = S_pad * LANE

    pred = y_pred.reshape(N, C, HW)
    gt = y_true.reshape(N, C, HW)
    if HW_pad != HW:
        # Zero padding of BOTH tensors contributes nothing to intersection/union.
        pad = ((0, 0), (0, 0), (0, HW_pad - HW))
        pred = jnp.pad(pred, pad)
        gt = jnp.pad(gt, pad)
    pred = pred.reshape(N, C, S_pad, LANE)
    gt = gt.reshape(N, C, S_pad, LANE)

    K = S_pad // sub_tile
    kernel = functools.partial(_dice_partial_kernel, activation=activation,
                               hw=HW, hw_pad=HW_pad, sub_tile=sub_tile)

    bytes_accessed = (N * Cm1 * HW_pad * (pred.dtype.itemsize + gt.dtype.itemsize)
                      + N * Cm1 * 2 * LANE * 4)
    flops = 3 * N * Cm1 * HW_pad
    transcendentals = N * Cm1 * HW_pad if activation == "sigmoid" else 0

    return pl.pallas_call(
        kernel,
        out_shape=jax.ShapeDtypeStruct((N, Cm1, 2, LANE), jnp.float32),
        grid_spec=pltpu.PrefetchScalarGridSpec(
            num_scalar_prefetch=0,
            grid=(N, Cm1, K),                      # reduction (HW) axis last
            in_specs=[
                # class index_map returns c+1: class 0 is never fetched from HBM.
                pl.BlockSpec((None, None, sub_tile, LANE),
                             lambda n, c, k: (n, c + 1, k, 0)),
                pl.BlockSpec((None, None, sub_tile, LANE),
                             lambda n, c, k: (n, c + 1, k, 0)),
            ],
            out_specs=pl.BlockSpec((None, None, 2, LANE),
                                   lambda n, c, k: (n, c, 0, 0)),
            scratch_shapes=[pltpu.VMEM((1, LANE), jnp.float32),
                            pltpu.VMEM((1, LANE), jnp.float32)],
        ),
        compiler_params=pltpu.CompilerParams(
            dimension_semantics=("parallel", "parallel", "arbitrary"),
            vmem_limit_bytes=32 * 1024 * 1024,
        ),
        cost_estimate=pl.CostEstimate(
            flops=int(flops),
            transcendentals=int(transcendentals),
            bytes_accessed=int(bytes_accessed)),
    )(pred, gt)


class Loss:
    """JAX/Pallas port of the PyTorch `Loss` module (multi-class soft Dice loss)."""

    def __init__(self, num_classes, activation=None, reduction="mean"):
        # `reduction` is accepted for parity with the PyTorch module, which also
        # never uses it in forward().
        self.num_classes = num_classes
        self.activation = activation

    def __call__(self, y_pred, y_true):
        partials = dice_partial_sums(y_pred, y_true, self.num_classes,
                                     self.activation)            # (N, C-1, 2, 128)
        inter = jnp.sum(partials[:, :, 0, :], axis=-1)           # (N, C-1)
        union = jnp.sum(partials[:, :, 1, :], axis=-1)           # (N, C-1)
        dice = (2.0 * inter + EPS) / (union + EPS)               # (N, C-1)
        class_dice = jnp.mean(dice, axis=0)                      # diceCoeff: sum / N
        mean_dice = jnp.mean(class_dice)                         # classes 1..C-1
        return 1.0 - mean_dice


def _reference_loss(y_pred, y_true, num_classes, activation=None):
    """Pure-JAX reference mirroring the PyTorch code, for a sanity check."""
    N = y_pred.shape[0]
    class_dice = []
    for i in range(1, num_classes):
        p = y_pred[:, i:i + 1].reshape(N, -1).astype(jnp.float32)
        g = y_true[:, i:i + 1].reshape(N, -1).astype(jnp.float32)
        if activation == "sigmoid":
            p = jax.nn.sigmoid(p)
        inter = jnp.sum(p * g, axis=1)
        union = jnp.sum(p, axis=1) + jnp.sum(g, axis=1)
        dice = (2.0 * inter + EPS) / (union + EPS)
        class_dice.append(jnp.sum(dice) / N)
    mean_dice = sum(class_dice) / len(class_dice)
    return 1.0 - mean_dice


def _make_inputs(key, N, num_classes, H, W):
    k1, k2 = jax.random.split(key)
    y_pred = jax.random.uniform(k1, (N, num_classes, H, W), dtype=jnp.float32)
    labels = jax.random.randint(k2, (N, H, W), 0, num_classes)
    y_true = jax.nn.one_hot(labels, num_classes, dtype=jnp.float32)
    y_true = jnp.transpose(y_true, (0, 3, 1, 2))  # NCHW
    return y_pred, y_true


if __name__ == "__main__":
    key = jax.random.PRNGKey(0)
    k_a, k_b = jax.random.split(key)

    # Case 1: HW an exact multiple of 128 (no padding path).
    N, num_classes, H, W = 2, 4, 16, 16
    y_pred, y_true = _make_inputs(k_a, N, num_classes, H, W)
    loss_fn = Loss(num_classes=num_classes, activation=None)
    loss = jax.block_until_ready(loss_fn(y_pred, y_true))
    ref = jax.block_until_ready(_reference_loss(y_pred, y_true, num_classes, None))
    assert jnp.allclose(loss, ref, rtol=1e-5, atol=1e-5), (loss, ref)

    # Case 2: HW not a multiple of 128 (exercises the zero-padding path).
    N2, C2, H2, W2 = 2, 3, 10, 10
    y_pred2, y_true2 = _make_inputs(k_b, N2, C2, H2, W2)
    loss_fn2 = Loss(num_classes=C2, activation=None)
    loss2 = jax.block_until_ready(loss_fn2(y_pred2, y_true2))
    ref2 = jax.block_until_ready(_reference_loss(y_pred2, y_true2, C2, None))
    assert jnp.allclose(loss2, ref2, rtol=1e-5, atol=1e-5), (loss2, ref2)

    print("KERNEL_OK")
</pallas_src>

<mosaic_0001>
module attributes {stable_mosaic.version = 11 : i64} {
  func.func @_dice_partial_kernel(%arg0: i32, %arg1: i32, %arg2: i32, %arg3: memref<1x1x2x128xf32, #tpu.memory_space<vmem>>, %arg4: memref<1x1x2x128xf32, #tpu.memory_space<vmem>>, %arg5: memref<1x1x2x128xf32, #tpu.memory_space<vmem>>, %arg6: memref<1x128xf32, #tpu.memory_space<vmem>>, %arg7: memref<1x128xf32, #tpu.memory_space<vmem>>) attributes {dimension_semantics = [#tpu.dimension_semantics<parallel>, #tpu.dimension_semantics<parallel>, #tpu.dimension_semantics<arbitrary>], iteration_bounds = array<i64: 2, 3, 1>, scalar_prefetch = 0 : i64, scratch_operands = 2 : i64, tpu.core_type = #tpu.core_type<tc>, window_params = [{transform_indices = @transform_0, window_bounds = array<i64: 1, 1, 2, 128>}, {transform_indices = @transform_1, window_bounds = array<i64: 1, 1, 2, 128>}, {transform_indices = @transform_2, window_bounds = array<i64: 1, 1, 2, 128>}]} {
    %c0_i32 = arith.constant 0 : i32
    %0 = arith.cmpi eq, %arg2, %c0_i32 : i32
    %1 = arith.extui %0 : i1 to i32
    %c0_i32_0 = arith.constant 0 : i32
    %2 = arith.cmpi ne, %1, %c0_i32_0 : i32
    scf.if %2 {
      %cst_19 = arith.constant 0.000000e+00 : f32
      %22 = vector.broadcast %cst_19 : f32 to vector<1x128xf32>
      %c0_20 = arith.constant 0 : index
      %c0_21 = arith.constant 0 : index
      %23 = vector.load %arg6[%c0_20, %c0_21] : memref<1x128xf32, #tpu.memory_space<vmem>>, vector<1x128xf32>
      tpu.vector_store %arg6[%c0_20, %c0_21], %22 {strides = array<i32>} : memref<1x128xf32, #tpu.memory_space<vmem>>, vector<1x128xf32>,
      %cst_22 = arith.constant 0.000000e+00 : f32
      %24 = vector.broadcast %cst_22 : f32 to vector<1x128xf32>
      %c0_23 = arith.constant 0 : index
      %c0_24 = arith.constant 0 : index
      %25 = vector.load %arg7[%c0_23, %c0_24] : memref<1x128xf32, #tpu.memory_space<vmem>>, vector<1x128xf32>
      tpu.vector_store %arg7[%c0_23, %c0_24], %24 {strides = array<i32>} : memref<1x128xf32, #tpu.memory_space<vmem>>, vector<1x128xf32>,
    } else {
    }
    %c0 = arith.constant 0 : index
    %c0_1 = arith.constant 0 : index
    %c0_2 = arith.constant 0 : index
    %c0_3 = arith.constant 0 : index
    %3 = vector.load %arg3[%c0, %c0_1, %c0_2, %c0_3] : memref<1x1x2x128xf32, #tpu.memory_space<vmem>>, vector<1x1x2x128xf32>
    %4 = vector.shape_cast %3 : vector<1x1x2x128xf32> to vector<2x128xf32>
    %c0_4 = arith.constant 0 : index
    %c0_5 = arith.constant 0 : index
    %c0_6 = arith.constant 0 : index
    %c0_7 = arith.constant 0 : index
    %5 = vector.load %arg4[%c0_4, %c0_5, %c0_6, %c0_7] : memref<1x1x2x128xf32, #tpu.memory_space<vmem>>, vector<1x1x2x128xf32>
    %6 = vector.shape_cast %5 : vector<1x1x2x128xf32> to vector<2x128xf32>
    %c0_8 = arith.constant 0 : index
    %c0_9 = arith.constant 0 : index
    %7 = vector.load %arg6[%c0_8, %c0_9] : memref<1x128xf32, #tpu.memory_space<vmem>>, vector<1x128xf32>
    %8 = arith.mulf %4, %6 : vector<2x128xf32>
    %cst = arith.constant dense<0.000000e+00> : vector<128xf32>
    %9 = vector.multi_reduction <add>, %8, %cst [0] : vector<2x128xf32> to vector<128xf32>
    %10 = vector.shape_cast %9 : vector<128xf32> to vector<1x128xf32>
    %11 = arith.addf %7, %10 : vector<1x128xf32>
    %c0_10 = arith.constant 0 : index
    %c0_11 = arith.constant 0 : index
    %12 = vector.load %arg6[%c0_10, %c0_11] : memref<1x128xf32, #tpu.memory_space<vmem>>, vector<1x128xf32>
    tpu.vector_store %arg6[%c0_10, %c0_11], %11 {strides = array<i32>} : memref<1x128xf32, #tpu.memory_space<vmem>>, vector<1x128xf32>,
    %c0_12 = arith.constant 0 : index
    %c0_13 = arith.constant 0 : index
    %13 = vector.load %arg7[%c0_12, %c0_13] : memref<1x128xf32, #tpu.memory_space<vmem>>, vector<1x128xf32>
    %14 = arith.addf %4, %6 : vector<2x128xf32>
    %cst_14 = arith.constant dense<0.000000e+00> : vector<128xf32>
    %15 = vector.multi_reduction <add>, %14, %cst_14 [0] : vector<2x128xf32> to vector<128xf32>
    %16 = vector.shape_cast %15 : vector<128xf32> to vector<1x128xf32>
    %17 = arith.addf %13, %16 : vector<1x128xf32>
    %c0_15 = arith.constant 0 : index
    %c0_16 = arith.constant 0 : index
    %18 = vector.load %arg7[%c0_15, %c0_16] : memref<1x128xf32, #tpu.memory_space<vmem>>, vector<1x128xf32>
    tpu.vector_store %arg7[%c0_15, %c0_16], %17 {strides = array<i32>} : memref<1x128xf32, #tpu.memory_space<vmem>>, vector<1x128xf32>,
    %c0_i32_17 = arith.constant 0 : i32
    %19 = arith.cmpi eq, %arg2, %c0_i32_17 : i32
    %20 = arith.extui %19 : i1 to i32
    %c0_i32_18 = arith.constant 0 : i32
    %21 = arith.cmpi ne, %20, %c0_i32_18 : i32
    scf.if %21 {
      %c0_19 = arith.constant 0 : index
      %c0_20 = arith.constant 0 : index
      %22 = vector.load %arg6[%c0_19, %c0_20] : memref<1x128xf32, #tpu.memory_space<vmem>>, vector<1x128xf32>
      %c0_21 = arith.constant 0 : index
      %c0_22 = arith.constant 0 : index
      %c0_23 = arith.constant 0 : index
      %c0_24 = arith.constant 0 : index
      %23 = vector.load %arg5[%c0_21, %c0_22, %c0_23, %c0_24] : memref<1x1x2x128xf32, #tpu.memory_space<vmem>>, vector<1x1x1x128xf32>
      %24 = vector.shape_cast %23 : vector<1x1x1x128xf32> to vector<1x128xf32>
      %25 = vector.shape_cast %22 : vector<1x128xf32> to vector<1x1x1x128xf32>
      tpu.vector_store %arg5[%c0_21, %c0_22, %c0_23, %c0_24], %25 {strides = array<i32>} : memref<1x1x2x128xf32, #tpu.memory_space<vmem>>, vector<1x1x1x128xf32>,
      %c0_25 = arith.constant 0 : index
      %c0_26 = arith.constant 0 : index
      %26 = vector.load %arg7[%c0_25, %c0_26] : memref<1x128xf32, #tpu.memory_space<vmem>>, vector<1x128xf32>
      %c0_27 = arith.constant 0 : index
      %c0_28 = arith.constant 0 : index
      %c1 = arith.constant 1 : index
      %c0_29 = arith.constant 0 : index
      %27 = vector.load %arg5[%c0_27, %c0_28, %c1, %c0_29] : memref<1x1x2x128xf32, #tpu.memory_space<vmem>>, vector<1x1x1x128xf32>
      %28 = vector.shape_cast %27 : vector<1x1x1x128xf32> to vector<1x128xf32>
      %29 = vector.shape_cast %26 : vector<1x128xf32> to vector<1x1x1x128xf32>
      tpu.vector_store %arg5[%c0_27, %c0_28, %c1, %c0_29], %29 {strides = array<i32>} : memref<1x1x2x128xf32, #tpu.memory_space<vmem>>, vector<1x1x1x128xf32>,
    } else {
    }
    return
  }
  func.func @transform_0(%arg0: i32, %arg1: i32, %arg2: i32) -> (i32, i32, i32, i32) {
    %c1_i32 = arith.constant 1 : i32
    %0 = arith.addi %arg1, %c1_i32 : i32
    %c0_i32 = arith.constant 0 : i32
    %c0_i32_0 = arith.constant 0 : i32
    return %arg0, %0, %arg2, %c0_i32 : i32, i32, i32, i32
  }
  func.func @transform_1(%arg0: i32, %arg1: i32, %arg2: i32) -> (i32, i32, i32, i32) {
    %c1_i32 = arith.constant 1 : i32
    %0 = arith.addi %arg1, %c1_i32 : i32
    %c0_i32 = arith.constant 0 : i32
    %c0_i32_0 = arith.constant 0 : i32
    return %arg0, %0, %arg2, %c0_i32 : i32, i32, i32, i32
  }
  func.func @transform_2(%arg0: i32, %arg1: i32, %arg2: i32) -> (i32, i32, i32, i32) {
    %c0_i32 = arith.constant 0 : i32
    %c0_i32_0 = arith.constant 0 : i32
    %c0_i32_1 = arith.constant 0 : i32
    return %arg0, %arg1, %c0_i32, %c0_i32_0 : i32, i32, i32, i32
  }
}

</mosaic_0001>

<llo_original>
// kernel: tpu_custom_call.1
$region0: #{tpu_custom_call.1}
  #allocation0 [shape = 'u32[]', space=smem, size = 0x4, offset = 0x4, fixed_abs, tag = 'smem constant byte address 0x4 - core index']
  #allocation1 [shape = 'u32[144,128]{1,0:T(1,128)}', space=vmem, size = 0x12000, scoped, tag = 'internal scratch']
  #allocation2 [shape = 'f32[1,128]{1,0:T(1,128)}', space=vmem, size = 0x200, scoped, tag = 'scratch operand']
  #allocation3 [shape = 'f32[1,128]{1,0:T(1,128)}', space=vmem, size = 0x200, scoped, tag = 'scratch operand']
  %s0 = inlined_call_operand.hbm [shape: f32[2,4,2,128], index: 0, kind: input, shape index: {}]
  %s1 = inlined_call_operand.hbm [shape: f32[2,4,2,128], index: 1, kind: input, shape index: {}]
  %s2 = inlined_call_operand.hbm [shape: f32[2,3,2,128], index: 2, kind: output, shape index: {}]
  %s3 = sld [smem:[#allocation0]]
  $region57: #{tpu_custom_call.1} parent=0
    _
  %s5 = ssub.s32 1, %s3
  %s6 = scalar_select 0, %s5, %s3
  $region1: #{tpu_custom_call.1} parent=0
    #allocation4 [shape = 'u8[2048]{0}', space=vmem, size = 0x800, scoped, tag = 'input window, operand 0']
    #allocation5 [shape = 's32[2]{0}', space=sflag, size = 0x8, scoped, tag = 'scoped memory for tpu_custom_call.1']
    #allocation6 [shape = 's32[2]{0}', space=sflag, size = 0x8, scoped, tag = 'scoped memory for tpu_custom_call.1']
    #allocation7 [shape = 'u8[2048]{0}', space=vmem, size = 0x800, scoped, tag = 'input window, operand 1']
    #allocation8 [shape = 's32[2]{0}', space=sflag, size = 0x8, scoped, tag = 'scoped memory for tpu_custom_call.1']
    #allocation9 [shape = 'u8[2048]{0}', space=vmem, size = 0x800, scoped, tag = 'output window, operand 0']
    %7 = vsyncpa [#allocation5], 0
    %s8 = scalar_lea.sflag [#allocation5], 1
    %9 = vsyncpa %s8, 0
    %10 = vsyncpa [#allocation8], 0
    %s11 = scalar_lea.sflag [#allocation8], 1
    %12 = vsyncpa %s11, 0
    %13 = vsyncpa [#allocation6], 0
    %s14 = scalar_lea.sflag [#allocation6], 1
    %15 = vsyncpa %s14, 0
    loop: start=0, step=1, limit=8
    $region2: #{tpu_custom_call.1} parent=1 // loop_pre_header
      _
    $region3: #{tpu_custom_call.1} parent=1 // loop_header
      %s17 = sphi 0, %s21
      %p18 = scmp.ge.s32.totalorder %s17, 8
      %s24 = sphi 0, %s43
      %s25 = sphi 0, %s39
      %s26 = sphi 0, %s35
      %s27 = sphi 0, %s24
      %s28 = sphi 0, %s25
      %s29 = sphi 0, %s26
      %s30 = sphi 0, %s27
      %s31 = sphi 0, %s28
      %s32 = sphi 0, %s29
      %s52 = sphi 0, %s54
      %s55 = sphi 0, %s52
      %s56 = sphi 0, %s55
      %s72 = sphi 0, %s56
      %s84 = sphi 0, %s86
      %s87 = sphi 0, %s84
      %s88 = sphi 0, %s87
      %s104 = sphi 0, %s88
      %s112 = sphi 0, %s114
      %s115 = sphi 0, %s112
      %s116 = sphi 0, %s115
      %s132 = sphi 0, %s116
    $region4: #{tpu_custom_call.1} parent=1 // loop_header_branch
      %20 = sbr.rel (%p18) target = $region8
    $region5: #{tpu_custom_call.1} parent=1 // loop_body
      %s22 = ssub.s32 %s17, 1
      %s23 = ssub.s32 %s17, 2
      %s33 = sadd.s32 1, %s26
      %p34 = scmp.ge.s32.totalorder %s33, 1
      %s35 = scalar_select %p34, 0, %s33
      %s36 = sadd.s32 1, %s25
      %s37 = scalar_select %p34, %s36, %s25
      %p38 = scmp.ge.s32.totalorder %s37, 3
      %s39 = scalar_select %p38, 0, %s37
      %s40 = sadd.s32 1, %s24
      %s41 = scalar_select %p38, %s40, %s24
      %p42 = scmp.ge.s32.totalorder %s41, 2
      %s43 = scalar_select %p42, 0, %s41
      %s44 = sadd.s32 %s25, 1
      %s45 = sadd.s32 %s39, 1
      %s46 = ssub.s32 %s24, %s43
      %s47 = ssub.s32 %s44, %s45
      %s48 = sor.u32 %s46, %s47
      %s49 = ssub.s32 %s26, %s35
      %s50 = sor.u32 %s48, %s49
      %p51 = scmp.eq.s32.totalorder %s50, 0
      %s53 = sadd.s32 %s52, 1
      %s54 = scalar_select %p51, %s52, %s53
      %p57 = pneg %p51
      %p58 = scmp.eq.s32.totalorder %s17, 5
      %p59 = por %p57, %p58
      %p60 = scmp.ne.s32.totalorder %s52, %s55
      %p61 = scmp.eq.s32.totalorder %s17, 0
      %p62 = por %p60, %p61
      %p63 = scmp.ne.s32.totalorder %s52, %s55
      %p64 = scmp.eq.s32.totalorder %s22, 5
      %p65 = por %p63, %p64
      %p66 = scmp.ne.s32.totalorder %s55, %s56
      %p67 = scmp.eq.s32.totalorder %s22, 0
      %p68 = por %p66, %p67
      %p69 = scmp.ne.s32.totalorder %s55, %s56
      %p70 = scmp.eq.s32.totalorder %s23, 5
      %p71 = por %p69, %p70
      %p73 = scmp.ne.s32.totalorder %s56, %s72
      %p74 = scmp.eq.s32.totalorder %s23, 0
      %p75 = por %p73, %p74
      %s76 = sadd.s32 %s25, 1
      %s77 = sadd.s32 %s39, 1
      %s78 = ssub.s32 %s24, %s43
      %s79 = ssub.s32 %s76, %s77
      %s80 = sor.u32 %s78, %s79
      %s81 = ssub.s32 %s26, %s35
      %s82 = sor.u32 %s80, %s81
      %p83 = scmp.eq.s32.totalorder %s82, 0
      %s85 = sadd.s32 %s84, 1
      %s86 = scalar_select %p83, %s84, %s85
      %p89 = pneg %p83
      %p90 = scmp.eq.s32.totalorder %s17, 5
      %p91 = por %p89, %p90
      %p92 = scmp.ne.s32.totalorder %s84, %s87
      %p93 = scmp.eq.s32.totalorder %s17, 0
      %p94 = por %p92, %p93
      %p95 = scmp.ne.s32.totalorder %s84, %s87
      %p96 = scmp.eq.s32.totalorder %s22, 5
      %p97 = por %p95, %p96
      %p98 = scmp.ne.s32.totalorder %s87, %s88
      %p99 = scmp.eq.s32.totalorder %s22, 0
      %p100 = por %p98, %p99
      %p101 = scmp.ne.s32.totalorder %s87, %s88
      %p102 = scmp.eq.s32.totalorder %s23, 5
      %p103 = por %p101, %p102
      %p105 = scmp.ne.s32.totalorder %s88, %s104
      %p106 = scmp.eq.s32.totalorder %s23, 0
      %p107 = por %p105, %p106
      %s108 = ssub.s32 %s24, %s43
      %s109 = ssub.s32 %s25, %s39
      %s110 = sor.u32 %s108, %s109
      %p111 = scmp.eq.s32.totalorder %s110, 0
      %s113 = sadd.s32 %s112, 1
      %s114 = scalar_select %p111, %s112, %s113
      %p117 = pneg %p111
      %p118 = scmp.eq.s32.totalorder %s17, 5
      %p119 = por %p117, %p118
      %p120 = scmp.ne.s32.totalorder %s112, %s115
      %p121 = scmp.eq.s32.totalorder %s17, 0
      %p122 = por %p120, %p121
      %p123 = scmp.ne.s32.totalorder %s112, %s115
      %p124 = scmp.eq.s32.totalorder %s22, 5
      %p125 = por %p123, %p124
      %p126 = scmp.ne.s32.totalorder %s115, %s116
      %p127 = scmp.eq.s32.totalorder %s22, 0
      %p128 = por %p126, %p127
      %p129 = scmp.ne.s32.totalorder %s115, %s116
      %p130 = scmp.eq.s32.totalorder %s23, 5
      %p131 = por %p129, %p130
      %p133 = scmp.ne.s32.totalorder %s116, %s132
      %p134 = scmp.eq.s32.totalorder %s23, 0
      %p135 = por %p133, %p134
      %p136 = scmp.le.s32.totalorder 1, %s17
      %p137 = scmp.lt.s32.totalorder %s17, 7
      %p138 = pnand %p136, %p137
      %p139 = pneg %p138
      // Predicated region
      $region9: #{tpu_custom_call.1} parent=5 // pred_check
        _
      $region10: #{tpu_custom_call.1} parent=5 // pred_check_branch
        %141 = sbr.rel (%p138) target = $region12
      $region11: #{tpu_custom_call.1} parent=5 // pred_region
        %s142 = ssub.s32 %s17, 1
      $region12: #{tpu_custom_call.1} parent=5 // pred_fallthru
        _
      %p143 = scmp.lt.s32.totalorder %s17, 6
      // Predicated region
      $region13: #{tpu_custom_call.1} parent=5 // pred_check
        %p144 = pneg %p143
      $region14: #{tpu_custom_call.1} parent=5 // pred_check_branch
        %146 = sbr.rel (%p144) target = $region16
      $region15: #{tpu_custom_call.1} parent=5 // pred_region
        // Predicated region
        $region17: #{tpu_custom_call.1} parent=15 // pred_check
          %p147 = pneg %p62
        $region18: #{tpu_custom_call.1} parent=15 // pred_check_branch
          %149 = sbr.rel (%p147) target = $region20
        $region19: #{tpu_custom_call.1} parent=15 // pred_region
          %s150 = sand.u32 %s52, 1
          %s151 = scalar_lea.sflag [#allocation5], %s150
          %s152 = sand.u32 %s52, 1
          %s153 = smul.addr %s152, 2
          %s154 = scalar_lea.vmem [#allocation4], %s153
          %s155 = sadd.s32 %s25, 1
          %s157 = ssub.s32 32, 32
          %158 = vsyncadd %s151, %s157
          %s159 = sadd.s32 %s26, %s155
          %s160 = smul.addr %s24, 4
          %s161 = sadd.s32 %s159, %s160
          %s162 = smul.addr %s161, 32
          %s163 = scalar_lea.hbm %s0, %s162
          %s165 = sshll.u32 %s154, 4
          %s166 = int_to_ptr.vmem [resolvable:$true] %s165
          %168 = dma.hbm_to_vmem [thread:$0]  %s163, 32, %s166, %s151
        $region20: #{tpu_custom_call.1} parent=15 // pred_fallthru
          _
        // Predicated region
        $region21: #{tpu_custom_call.1} parent=15 // pred_check
          %p169 = pneg %p94
        $region22: #{tpu_custom_call.1} parent=15 // pred_check_branch
          %171 = sbr.rel (%p169) target = $region24
        $region23: #{tpu_custom_call.1} parent=15 // pred_region
          %s172 = sand.u32 %s84, 1
          %s173 = scalar_lea.sflag [#allocation8], %s172
          %s174 = sand.u32 %s84, 1
          %s175 = smul.addr %s174, 2
          %s176 = scalar_lea.vmem [#allocation7], %s175
          %s177 = sadd.s32 %s25, 1
          %s179 = ssub.s32 32, 32
          %180 = vsyncadd %s173, %s179
          %s181 = sadd.s32 %s26, %s177
          %s182 = smul.addr %s24, 4
          %s183 = sadd.s32 %s181, %s182
          %s184 = smul.addr %s183, 32
          %s185 = scalar_lea.hbm %s1, %s184
          %s187 = sshll.u32 %s176, 4
          %s188 = int_to_ptr.vmem [resolvable:$true] %s187
          %190 = dma.hbm_to_vmem [thread:$0]  %s185, 32, %s188, %s173
        $region24: #{tpu_custom_call.1} parent=15 // pred_fallthru
          _
      $region16: #{tpu_custom_call.1} parent=5 // pred_fallthru
        _
      %p191 = scmp.le.s32.totalorder 1, %s17
      %p192 = scmp.lt.s32.totalorder %s17, 7
      %p193 = pnand %p191, %p192
      %p194 = pneg %p193
      // Predicated region
      $region25: #{tpu_custom_call.1} parent=5 // pred_check
        _
      $region26: #{tpu_custom_call.1} parent=5 // pred_check_branch
        %196 = sbr.rel (%p193) target = $region28
      $region27: #{tpu_custom_call.1} parent=5 // pred_region
        %s197 = ssub.s32 %s17, 1
        %s198 = sand.u32 %s55, 1
        %s199 = scalar_lea.sflag [#allocation5], %s198
        %s200 = sand.u32 %s55, 1
        %s201 = smul.addr %s200, 2
        %s202 = scalar_lea.vmem [#allocation4], %s201
        // Predicated region
        $region29: #{tpu_custom_call.1} parent=27 // pred_check
          %p203 = pneg %p68
        $region30: #{tpu_custom_call.1} parent=27 // pred_check_branch
          %205 = sbr.rel (%p203) target = $region32
        $region31: #{tpu_custom_call.1} parent=27 // pred_region
          %206 = dma.done %s199, 32
        $region32: #{tpu_custom_call.1} parent=27 // pred_fallthru
          _
        %s207 = sand.u32 %s87, 1
        %s208 = scalar_lea.sflag [#allocation8], %s207
        %s209 = sand.u32 %s87, 1
        %s210 = smul.addr %s209, 2
        %s211 = scalar_lea.vmem [#allocation7], %s210
        // Predicated region
        $region33: #{tpu_custom_call.1} parent=27 // pred_check
          %p212 = pneg %p100
        $region34: #{tpu_custom_call.1} parent=27 // pred_check_branch
          %214 = sbr.rel (%p212) target = $region36
        $region35: #{tpu_custom_call.1} parent=27 // pred_region
          %215 = dma.done %s208, 32
        $region36: #{tpu_custom_call.1} parent=27 // pred_fallthru
          _
        %s216 = sand.u32 %s55, 1
        %s217 = scalar_lea.sflag [#allocation5], %s216
        %s218 = sand.u32 %s55, 1
        %s219 = smul.addr %s218, 2
        %s220 = scalar_lea.vmem [#allocation4], %s219
        %p221 = pneg %p68
        %p222 = pneg %p65
        %s223 = sand.u32 %s87, 1
        %s224 = scalar_lea.sflag [#allocation8], %s223
        %s225 = sand.u32 %s87, 1
        %s226 = smul.addr %s225, 2
        %s227 = scalar_lea.vmem [#allocation7], %s226
        %p228 = pneg %p100
        %p229 = pneg %p97
        %p230 = pneg %p128
        %p231 = pneg %p125
        %s232 = sand.u32 %s115, 1
        %s233 = scalar_lea.sflag [#allocation6], %s232
        %s234 = sand.u32 %s115, 1
        %s235 = smul.addr %s234, 2
        %s236 = scalar_lea.vmem [#allocation9], %s235
        %s237 = sadd.s32 %s28, 1
        %s238 = sadd.s32 %s28, 1
        %p239 = scmp.eq.s32.totalorder %s29, 0
        // Predicated region
        $region37: #{tpu_custom_call.1} parent=27 // pred_check
          %p240 = pneg %p239
        $region38: #{tpu_custom_call.1} parent=27 // pred_check_branch
          %242 = sbr.rel (%p240) target = $region40
        $region39: #{tpu_custom_call.1} parent=27 // pred_region
          %243 = vst [vmem:[#allocation2] sm:$0x1] 0.0
          %244 = vst [vmem:[#allocation3] sm:$0x1] 0.0
        $region40: #{tpu_custom_call.1} parent=27 // pred_fallthru
          _
        %v245 = vld [vmem:[%s202] sm:$0x3]
        %v246 = vld [vmem:[%s211] sm:$0x3]
        %v247 = vld [vmem:[#allocation2] sm:$0x1]
        %v248 = vmul.f32 %v245, %v246
        %vm249 = vcmask 1041408
        %v250 = vsel %vm249, %v248, 0.0
        %v251 = vrot.slane %v250, 4
        %v252 = vadd.f32 %v250, %v251
        %v253 = vrot.slane %v252, 2
        %v254 = vadd.f32 %v252, %v253
        %v255 = vrot.slane %v254, 1
        %v256 = vadd.f32 %v254, %v255
        %v257 = vadd.f32 %v247, %v256
        %258 = vst [vmem:[#allocation2] sm:$0x1] %v257
        %v259 = vld [vmem:[#allocation3] sm:$0x1]
        %v260 = vadd.f32 %v245, %v246
        %v261 = vsel %vm249, %v260, 0.0
        %v262 = vrot.slane %v261, 4
        %v263 = vadd.f32 %v261, %v262
        %v264 = vrot.slane %v263, 2
        %v265 = vadd.f32 %v263, %v264
        %v266 = vrot.slane %v265, 1
        %v267 = vadd.f32 %v265, %v266
        %v268 = vadd.f32 %v259, %v267
        %269 = vst [vmem:[#allocation3] sm:$0x1] %v268
        // Predicated region
        $region41: #{tpu_custom_call.1} parent=27 // pred_check
          %p270 = pneg %p239
        $region42: #{tpu_custom_call.1} parent=27 // pred_check_branch
          %272 = sbr.rel (%p270) target = $region44
        $region43: #{tpu_custom_call.1} parent=27 // pred_region
          %v273 = vld [vmem:[#allocation2] sm:$0x1]
          %274 = vst [vmem:[%s236] sm:$0x1] %v273
          %v275 = vld [vmem:[#allocation3] sm:$0x1]
          %276 = vst [vmem:[%s236 + $0x1] sm:$0x1] %v275
        $region44: #{tpu_custom_call.1} parent=27 // pred_fallthru
          _
        %s277 = sand.u32 %s115, 1
        %s278 = scalar_lea.sflag [#allocation6], %s277
        %s279 = sand.u32 %s115, 1
        %s280 = smul.addr %s279, 2
        %s281 = scalar_lea.vmem [#allocation9], %s280
        // Predicated region
        $region45: #{tpu_custom_call.1} parent=27 // pred_check
          %p282 = pneg %p125
        $region46: #{tpu_custom_call.1} parent=27 // pred_check_branch
          %284 = sbr.rel (%p282) target = $region48
        $region47: #{tpu_custom_call.1} parent=27 // pred_region
          %s286 = ssub.s32 32, 32
          %287 = vsyncadd %s278, %s286
          %s288 = smul.addr %s27, 3
          %s289 = sadd.s32 %s28, %s288
          %s290 = smul.addr %s289, 32
          %s291 = scalar_lea.hbm %s2, %s290
          %s293 = sshll.u32 %s281, 4
          %s294 = int_to_ptr.vmem [resolvable:$true] %s293
          %296 = dma.vmem_to_hbm [thread:$0]  %s294, 32, %s291, %s278
        $region48: #{tpu_custom_call.1} parent=27 // pred_fallthru
          _
      $region28: #{tpu_custom_call.1} parent=5 // pred_fallthru
        _
      %p297 = scmp.le.s32.totalorder 2, %s17
      // Predicated region
      $region49: #{tpu_custom_call.1} parent=5 // pred_check
        %p298 = pneg %p297
      $region50: #{tpu_custom_call.1} parent=5 // pred_check_branch
        %300 = sbr.rel (%p298) target = $region52
      $region51: #{tpu_custom_call.1} parent=5 // pred_region
        %s301 = ssub.s32 %s17, 2
        // Predicated region
        $region53: #{tpu_custom_call.1} parent=51 // pred_check
          %p302 = pneg %p131
        $region54: #{tpu_custom_call.1} parent=51 // pred_check_branch
          %304 = sbr.rel (%p302) target = $region56
        $region55: #{tpu_custom_call.1} parent=51 // pred_region
          %s305 = sand.u32 %s116, 1
          %s306 = scalar_lea.sflag [#allocation6], %s305
          %s307 = sand.u32 %s116, 1
          %s308 = smul.addr %s307, 2
          %s309 = scalar_lea.vmem [#allocation9], %s308
          %310 = dma.done %s306, 32
        $region56: #{tpu_custom_call.1} parent=51 // pred_fallthru
          _
      $region52: #{tpu_custom_call.1} parent=5 // pred_fallthru
        _
    $region6: #{tpu_custom_call.1} parent=1 // loop_footer
      %s21 = sadd.s32 1, %s17
    $region7: #{tpu_custom_call.1} parent=1 // loop_footer_branch
      %16 = sbr.rel target = $region3
    $region8: #{tpu_custom_call.1} parent=1 // loop_exit
      _
    %311 = vsyncpa [#allocation5], 1
    %s312 = scalar_lea.sflag [#allocation5], 1
    %313 = vsyncpa %s312, 1
    %314 = vsyncpa [#allocation8], 1
    %s315 = scalar_lea.sflag [#allocation8], 1
    %316 = vsyncpa %s315, 1
    %317 = vsyncpa [#allocation6], 1
    %s318 = scalar_lea.sflag [#allocation6], 1
    %319 = vsyncpa %s318, 1

</llo_original>
